<compile_context>
chip_gen: v5e
topology: v5e:2x2
jax: 0.10.0
libtpu: 0.0.40
codegen_flags: <defaults>
</compile_context>

<pallas_src>
import functools
import math

import jax
import jax.numpy as jnp
from jax.experimental import pallas as pl
from jax.experimental.pallas import tpu as pltpu


def _round_up(x, m):
    return ((x + m - 1) // m) * m


def _sublane_pack(dtype):
    # Rows per packed sublane group: f32 -> 8, bf16 -> 16, int8/fp8 -> 32.
    return max(8, 32 // jnp.dtype(dtype).itemsize)


def _vmem_capacity_bytes():
    # Generation-aware VMEM capacity (v5e/v6e: 128 MiB, v7x: 64 MiB per TC).
    try:
        cap = int(pltpu.get_tpu_info().vmem_capacity_bytes)
        if cap > 0:
            return cap
    except Exception:
        pass
    return 64 * 1024 * 1024  # conservative (v7x-sized) fallback


def _rmsnorm_gated_kernel(x_ref, g_ref, w_ref, o_ref, *,
                          eps, inv_hidden, hidden, needs_mask, cast_dtype):
    # Hot path: silu gating, mean-of-squares reduction, rsqrt scaling, weight mul.
    x = x_ref[...].astype(jnp.float32)
    g = g_ref[...].astype(jnp.float32)
    x = x * (g * jax.nn.sigmoid(g))                        # x * silu(gate), f32
    if needs_mask:
        # Block last dim == full hidden extent but hidden % 128 != 0: physical
        # tail-lane contents are unspecified, so zero them before the reduce.
        lane = jax.lax.broadcasted_iota(jnp.int32, x.shape, 1)
        x = jnp.where(lane < hidden, x, 0.0)
    var = jnp.sum(x * x, axis=-1, keepdims=True) * inv_hidden
    x = x * jax.lax.rsqrt(var + eps)
    # PyTorch: weight (native dtype) * hidden_states.to(input_dtype)
    o_ref[...] = (w_ref[...] * x.astype(cast_dtype)).astype(o_ref.dtype)


def _rmsnorm_kernel(x_ref, w_ref, o_ref, *,
                    eps, inv_hidden, hidden, needs_mask, cast_dtype):
    x = x_ref[...].astype(jnp.float32)
    if needs_mask:
        lane = jax.lax.broadcasted_iota(jnp.int32, x.shape, 1)
        x = jnp.where(lane < hidden, x, 0.0)
    var = jnp.sum(x * x, axis=-1, keepdims=True) * inv_hidden
    x = x * jax.lax.rsqrt(var + eps)
    o_ref[...] = (w_ref[...] * x.astype(cast_dtype)).astype(o_ref.dtype)


def mamba_rmsnorm_gated(hidden_states, weight, gate=None, eps=1e-6,
                        block_rows=None, out_dtype=None):
    """JAX/Pallas equivalent of MambaRMSNormGated.forward."""
    input_dtype = hidden_states.dtype
    if out_dtype is None:
        # PyTorch result dtype: weight (native dtype) * x.to(input_dtype)
        out_dtype = jnp.promote_types(weight.dtype, input_dtype)
    out_dtype = jnp.dtype(out_dtype)

    orig_shape = hidden_states.shape
    hidden = int(orig_shape[-1])
    rows = int(math.prod(orig_shape[:-1])) if len(orig_shape) > 1 else 1

    x2d = hidden_states.reshape(rows, hidden)
    w2d = weight.reshape(1, hidden)
    g2d = gate.reshape(rows, hidden) if gate is not None else None

    in_bytes = jnp.dtype(input_dtype).itemsize
    out_bytes = out_dtype.itemsize
    gate_bytes = jnp.dtype(gate.dtype).itemsize if gate is not None else 0
    w_bytes = jnp.dtype(weight.dtype).itemsize

    pack = max(_sublane_pack(input_dtype), _sublane_pack(out_dtype))
    if gate is not None:
        pack = max(pack, _sublane_pack(gate.dtype))

    # Generation-aware VMEM sizing: double-buffered x [+ gate] + out streams,
    # with headroom for the resident weight buffer and Mosaic internal scratch.
    vmem_cap = _vmem_capacity_bytes()
    vmem_limit = vmem_cap - (8 << 20)
    stream_budget = max(16 << 20, vmem_limit - (16 << 20))

    bytes_per_row = hidden * (in_bytes + out_bytes + gate_bytes)
    if block_rows is None:
        # Largest row tile whose double-buffered streams fit the budget,
        # rounded down to the sublane packing factor.
        byte_tm = max(pack, (stream_budget // (2 * bytes_per_row) // pack) * pack)
        if rows <= pack:
            tm = rows                                             # single full-extent block
        elif rows >= 8 * pack:
            # Target >= 4 grid steps: pipelining per core, >= 2 steps per TC on v7x.
            tm = min(byte_tm, _round_up(pl.cdiv(rows, 4), pack))
        elif rows >= 4 * pack:
            tm = min(byte_tm, _round_up(pl.cdiv(rows, 2), pack))
        else:
            tm = min(byte_tm, rows)
    else:
        tm = int(block_rows)
        tm = rows if tm >= rows else max(pack, (tm // pack) * pack)

    grid = (pl.cdiv(rows, tm),)       # ragged last block handled by Pallas
    needs_mask = (hidden % 128) != 0

    row_spec = pl.BlockSpec((tm, hidden), lambda i: (i, 0))
    w_spec = pl.BlockSpec((1, hidden), lambda i: (0, 0))
    out_shape = jax.ShapeDtypeStruct((rows, hidden), out_dtype)

    # Advisory cost estimate (mem-bound: bytes dominate, no padding traffic).
    n_elems = rows * hidden
    if gate is not None:
        flops = 9 * n_elems
        transcendentals = n_elems + rows
    else:
        flops = 4 * n_elems
        transcendentals = rows
    bytes_accessed = n_elems * (in_bytes + out_bytes + gate_bytes) + hidden * w_bytes
    cost = pl.CostEstimate(flops=flops, transcendentals=transcendentals,
                           bytes_accessed=bytes_accessed)

    compiler_params = pltpu.CompilerParams(
        dimension_semantics=("parallel",),
        vmem_limit_bytes=int(vmem_limit),
    )

    common = dict(eps=float(eps), inv_hidden=1.0 / float(hidden), hidden=hidden,
                  needs_mask=needs_mask, cast_dtype=input_dtype)

    if gate is not None:
        kernel = functools.partial(_rmsnorm_gated_kernel, **common)
        out = pl.pallas_call(
            kernel,
            out_shape=out_shape,
            grid_spec=pltpu.PrefetchScalarGridSpec(
                num_scalar_prefetch=0,
                grid=grid,
                in_specs=[row_spec, row_spec, w_spec],
                out_specs=row_spec,
            ),
            compiler_params=compiler_params,
            cost_estimate=cost,
        )(x2d, g2d, w2d)
    else:
        kernel = functools.partial(_rmsnorm_kernel, **common)
        out = pl.pallas_call(
            kernel,
            out_shape=out_shape,
            grid_spec=pltpu.PrefetchScalarGridSpec(
                num_scalar_prefetch=0,
                grid=grid,
                in_specs=[row_spec, w_spec],
                out_specs=row_spec,
            ),
            compiler_params=compiler_params,
            cost_estimate=cost,
        )(x2d, w2d)

    return out.reshape(orig_shape[:-1] + (hidden,))


def _reference(hidden_states, weight, gate, eps):
    # Pure-JAX reference mirroring the PyTorch forward.
    input_dtype = hidden_states.dtype
    x = hidden_states.astype(jnp.float32)
    if gate is not None:
        g = gate.astype(jnp.float32)
        x = x * (g * jax.nn.sigmoid(g))
    var = jnp.mean(x * x, axis=-1, keepdims=True)
    x = x * jax.lax.rsqrt(var + eps)
    return weight * x.astype(input_dtype)


if __name__ == "__main__":
    eps = 1e-6
    key = jax.random.PRNGKey(0)
    k1, k2, k3, k4 = jax.random.split(key, 4)

    # Small shapes consistent with the module: [batch, seq, hidden].
    batch, seq, hidden = 2, 8, 32
    hidden_states = jax.random.normal(k1, (batch, seq, hidden), dtype=jnp.float32)
    gate = jax.random.normal(k2, (batch, seq, hidden), dtype=jnp.float32)
    # Deterministic parameter init matching nn.Parameter(torch.ones(hidden_size)).
    weight = jnp.ones((hidden,), dtype=jnp.float32)

    out = jax.block_until_ready(
        mamba_rmsnorm_gated(hidden_states, weight, gate=gate, eps=eps))
    ref = _reference(hidden_states, weight, gate, eps)
    assert out.shape == ref.shape and out.dtype == ref.dtype
    assert jnp.allclose(out, ref, atol=1e-5, rtol=1e-5)

    # gate=None path.
    out_ng = jax.block_until_ready(
        mamba_rmsnorm_gated(hidden_states, weight, gate=None, eps=eps))
    ref_ng = _reference(hidden_states, weight, None, eps)
    assert jnp.allclose(out_ng, ref_ng, atol=1e-5, rtol=1e-5)

    # Ragged row count + non-128-multiple hidden (exercises the in-kernel lane
    # mask and the masked tail-lane / partial-row writeback, with NO wrapper
    # padding or output slicing).
    b2, s2, h2 = 3, 5, 96
    x2 = jax.random.normal(k3, (b2, s2, h2), dtype=jnp.float32)
    g2 = jax.random.normal(k4, (b2, s2, h2), dtype=jnp.float32)
    w2 = jnp.ones((h2,), dtype=jnp.float32)
    out2 = jax.block_until_ready(mamba_rmsnorm_gated(x2, w2, gate=g2, eps=eps))
    ref2 = _reference(x2, w2, g2, eps)
    assert out2.shape == ref2.shape and out2.dtype == ref2.dtype
    assert jnp.allclose(out2, ref2, atol=1e-5, rtol=1e-5)

    # bf16 activations with f32 weight (PyTorch default param dtype): output
    # promotes to f32, matching `weight * x.to(input_dtype)`.
    xb = hidden_states.astype(jnp.bfloat16)
    gb = gate.astype(jnp.bfloat16)
    outb = jax.block_until_ready(mamba_rmsnorm_gated(xb, weight, gate=gb, eps=eps))
    refb = _reference(xb, weight, gb, eps)
    assert outb.shape == refb.shape and outb.dtype == refb.dtype
    assert jnp.allclose(outb.astype(jnp.float32), refb.astype(jnp.float32),
                        atol=1e-2, rtol=1e-2)

    # Opt-in bf16 output (semantics override, saves store bandwidth downstream).
    outb16 = jax.block_until_ready(
        mamba_rmsnorm_gated(xb, weight, gate=gb, eps=eps, out_dtype=jnp.bfloat16))
    assert outb16.dtype == jnp.bfloat16
    assert jnp.allclose(outb16.astype(jnp.float32), refb.astype(jnp.float32),
                        atol=3e-2, rtol=3e-2)

    print("KERNEL_OK")
</pallas_src>

<mosaic_0001>
module attributes {stable_mosaic.version = 11 : i64} {
  func.func @_rmsnorm_gated_kernel(%arg0: i32, %arg1: memref<16x32xf32, #tpu.memory_space<vmem>>, %arg2: memref<16x32xf32, #tpu.memory_space<vmem>>, %arg3: memref<1x32xf32, #tpu.memory_space<vmem>>, %arg4: memref<16x32xf32, #tpu.memory_space<vmem>>) attributes {dimension_semantics = [#tpu.dimension_semantics<parallel>], iteration_bounds = array<i64: 1>, scalar_prefetch = 0 : i64, scratch_operands = 0 : i64, tpu.core_type = #tpu.core_type<tc>, window_params = [{transform_indices = @transform_0, window_bounds = array<i64: 16, 32>}, {transform_indices = @transform_1, window_bounds = array<i64: 16, 32>}, {pipeline_mode = #tpu.pipeline_mode<synchronous>, transform_indices = @transform_2, window_bounds = array<i64: 1, 32>}, {transform_indices = @transform_3, window_bounds = array<i64: 16, 32>}]} {
    %c0 = arith.constant 0 : index
    %c0_0 = arith.constant 0 : index
    %0 = vector.load %arg1[%c0, %c0_0] : memref<16x32xf32, #tpu.memory_space<vmem>>, vector<16x32xf32>
    %c0_1 = arith.constant 0 : index
    %c0_2 = arith.constant 0 : index
    %1 = vector.load %arg2[%c0_1, %c0_2] : memref<16x32xf32, #tpu.memory_space<vmem>>, vector<16x32xf32>
    %2 = arith.negf %1 : vector<16x32xf32>
    %3 = math.exp %2 : vector<16x32xf32>
    %cst = arith.constant 1.000000e+00 : f32
    %4 = vector.broadcast %cst : f32 to vector<16x32xf32>
    %5 = arith.addf %4, %3 : vector<16x32xf32>
    %6 = arith.divf %4, %5 : vector<16x32xf32>
    %7 = arith.mulf %1, %6 : vector<16x32xf32>
    %8 = arith.mulf %0, %7 : vector<16x32xf32>
    %9 = tpu.iota {dimensions = array<i32: 1>} : vector<16x32xi32>
    %c32_i32 = arith.constant 32 : i32
    %10 = vector.broadcast %c32_i32 : i32 to vector<16x32xi32>
    %11 = arith.cmpi slt, %9, %10 : vector<16x32xi32>
    %cst_3 = arith.constant 0.000000e+00 : f32
    %12 = vector.broadcast %cst_3 : f32 to vector<16x32xf32>
    %13 = arith.select %11, %8, %12 : vector<16x32xi1>, vector<16x32xf32>
    %14 = arith.mulf %13, %13 : vector<16x32xf32>
    %cst_4 = arith.constant dense<0.000000e+00> : vector<16xf32>
    %15 = vector.multi_reduction <add>, %14, %cst_4 [1] : vector<16x32xf32> to vector<16xf32>
    %16 = vector.shape_cast %15 : vector<16xf32> to vector<16x1xf32>
    %cst_5 = arith.constant 3.125000e-02 : f32
    %17 = vector.broadcast %cst_5 : f32 to vector<16x1xf32>
    %18 = arith.mulf %16, %17 : vector<16x1xf32>
    %cst_6 = arith.constant 9.99999997E-7 : f32
    %19 = vector.broadcast %cst_6 : f32 to vector<16x1xf32>
    %20 = arith.addf %18, %19 : vector<16x1xf32>
    %21 = math.rsqrt %20 : vector<16x1xf32>
    %22 = vector.broadcast %21 : vector<16x1xf32> to vector<16x32xf32>
    %23 = arith.mulf %13, %22 : vector<16x32xf32>
    %c0_7 = arith.constant 0 : index
    %c0_8 = arith.constant 0 : index
    %24 = vector.load %arg3[%c0_7, %c0_8] : memref<1x32xf32, #tpu.memory_space<vmem>>, vector<1x32xf32>
    %25 = vector.broadcast %24 : vector<1x32xf32> to vector<16x32xf32>
    %26 = arith.mulf %25, %23 : vector<16x32xf32>
    %c0_9 = arith.constant 0 : index
    %c0_10 = arith.constant 0 : index
    %27 = vector.load %arg4[%c0_9, %c0_10] : memref<16x32xf32, #tpu.memory_space<vmem>>, vector<16x32xf32>
    tpu.vector_store %arg4[%c0_9, %c0_10], %26 {strides = array<i32>} : memref<16x32xf32, #tpu.memory_space<vmem>>, vector<16x32xf32>,
    return
  }
  func.func @transform_0(%arg0: i32) -> (i32, i32) {
    %c0_i32 = arith.constant 0 : i32
    %c0_i32_0 = arith.constant 0 : i32
    return %arg0, %c0_i32 : i32, i32
  }
  func.func @transform_1(%arg0: i32) -> (i32, i32) {
    %c0_i32 = arith.constant 0 : i32
    %c0_i32_0 = arith.constant 0 : i32
    return %arg0, %c0_i32 : i32, i32
  }
  func.func @transform_2(%arg0: i32) -> (i32, i32) {
    %c0_i32 = arith.constant 0 : i32
    %c0_i32_0 = arith.constant 0 : i32
    %c0_i32_1 = arith.constant 0 : i32
    return %c0_i32, %c0_i32_0 : i32, i32
  }
  func.func @transform_3(%arg0: i32) -> (i32, i32) {
    %c0_i32 = arith.constant 0 : i32
    %c0_i32_0 = arith.constant 0 : i32
    return %arg0, %c0_i32 : i32, i32
  }
}

</mosaic_0001>

<llo_original>
// kernel: tpu_custom_call.1
$region0: #{tpu_custom_call.1}
  #allocation0 [shape = 'u32[]', space=smem, size = 0x4, offset = 0x4, fixed_abs, tag = 'smem constant byte address 0x4 - core index']
  #allocation1 [shape = 'u32[72,128]{1,0:T(1,128)}', space=vmem, size = 0x9000, scoped, tag = 'internal scratch']
  %s0 = inlined_call_operand.hbm [shape: f32[16,32], index: 0, kind: input, shape index: {}]
  %s1 = inlined_call_operand.hbm [shape: f32[16,32], index: 1, kind: input, shape index: {}]
  %s2 = inlined_call_operand.vmem [shape: f32[1,32], index: 2, kind: input, shape index: {}]
  %s3 = inlined_call_operand.hbm [shape: f32[16,32], index: 3, kind: output, shape index: {}]
  %s4 = sld [smem:[#allocation0]]
  $region30: #{tpu_custom_call.1} parent=0
    _
  %s6 = ssub.s32 1, %s4
  %s7 = scalar_select 0, %s6, %s4
  $region1: #{tpu_custom_call.1} parent=0
    #allocation2 [shape = 'u8[8192]{0}', space=vmem, size = 0x2000, scoped, tag = 'input window, operand 0, single buffered']
    #allocation3 [shape = 's32[1]{0}', space=sflag, size = 0x4, scoped, tag = 'scoped memory for tpu_custom_call.1']
    #allocation4 [shape = 's32[1]{0}', space=sflag, size = 0x4, scoped, tag = 'scoped memory for tpu_custom_call.1']
    #allocation5 [shape = 'u8[8192]{0}', space=vmem, size = 0x2000, scoped, tag = 'input window, operand 1, single buffered']
    #allocation6 [shape = 's32[1]{0}', space=sflag, size = 0x4, scoped, tag = 'scoped memory for tpu_custom_call.1']
    #allocation7 [shape = 'u8[8192]{0}', space=vmem, size = 0x2000, scoped, tag = 'output window, operand 0, single buffered']
    %8 = vsyncpa [#allocation3], 0
    %9 = vsyncpa [#allocation6], 0
    %10 = vsyncpa [#allocation4], 0
    // Predicated region
    $region2: #{tpu_custom_call.1} parent=1 // pred_check
      _
    $region3: #{tpu_custom_call.1} parent=1 // pred_check_branch
      %12 = sbr.rel (0) target = $region5
    $region4: #{tpu_custom_call.1} parent=1 // pred_region
      %14 = vsyncadd [#allocation3], 0
      %s15 = sshll.u32 %s0, 4
      %s16 = int_to_ptr.hbm [resolvable:$true] %s15
      %s17 = sshll.u32 [#allocation2], 4
      %s18 = int_to_ptr.vmem [resolvable:$true] %s17
      %23 = dma.hbm_to_vmem [thread:$0]  %s16, 256, %s18, [#allocation3], 128, 128, 8
    $region5: #{tpu_custom_call.1} parent=1 // pred_fallthru
      _
    // Predicated region
    $region6: #{tpu_custom_call.1} parent=1 // pred_check
      _
    $region7: #{tpu_custom_call.1} parent=1 // pred_check_branch
      %25 = sbr.rel (0) target = $region9
    $region8: #{tpu_custom_call.1} parent=1 // pred_region
      %27 = vsyncadd [#allocation6], 0
      %s28 = sshll.u32 %s1, 4
      %s29 = int_to_ptr.hbm [resolvable:$true] %s28
      %s30 = sshll.u32 [#allocation5], 4
      %s31 = int_to_ptr.vmem [resolvable:$true] %s30
      %36 = dma.hbm_to_vmem [thread:$0]  %s29, 256, %s31, [#allocation6], 128, 128, 8
    $region9: #{tpu_custom_call.1} parent=1 // pred_fallthru
      _
    // Predicated region
    $region10: #{tpu_custom_call.1} parent=1 // pred_check
      _
    $region11: #{tpu_custom_call.1} parent=1 // pred_check_branch
      %38 = sbr.rel (0) target = $region13
    $region12: #{tpu_custom_call.1} parent=1 // pred_region
      _
    $region13: #{tpu_custom_call.1} parent=1 // pred_fallthru
      _
    // Predicated region
    $region14: #{tpu_custom_call.1} parent=1 // pred_check
      _
    $region15: #{tpu_custom_call.1} parent=1 // pred_check_branch
      %40 = sbr.rel (0) target = $region17
    $region16: #{tpu_custom_call.1} parent=1 // pred_region
      %42 = dma.done [#allocation3], 256
    $region17: #{tpu_custom_call.1} parent=1 // pred_fallthru
      _
    // Predicated region
    $region18: #{tpu_custom_call.1} parent=1 // pred_check
      _
    $region19: #{tpu_custom_call.1} parent=1 // pred_check_branch
      %44 = sbr.rel (0) target = $region21
    $region20: #{tpu_custom_call.1} parent=1 // pred_region
      %46 = dma.done [#allocation6], 256
    $region21: #{tpu_custom_call.1} parent=1 // pred_fallthru
      _
    %v47 = vld [vmem:[#allocation2] sm:$0xff]
    %v48 = vld [vmem:[#allocation2 + $0x8] sm:$0xff]
    %v49 = vld [vmem:[#allocation5] sm:$0xff]
    %v50 = vld [vmem:[#allocation5 + $0x8] sm:$0xff]
    %v51 = vxor.u32 %v49, 2147483648
    %v52 = vxor.u32 %v50, 2147483648
    %v53 = vmul.f32 %v51, 1.442695
    %v54 = vpow.pop %v53
    %v55 = vmul.f32 %v52, 1.442695
    %v56 = vpow.pop %v55
    %v57 = vadd.f32 %v54, 1.0
    %v58 = vadd.f32 %v56, 1.0
    %v59 = vrcp.pop %v57
    %v60 = vmul.f32 %v57, %v59
    %v61 = vsub.f32 1.0, %v60
    %v62 = vmul.f32 %v59, %v61
    %v63 = vadd.f32 %v59, %v62
    %vm64 = vweird.f32 %v57
    %vm65 = vweird.f32 %v59
    %vm66 = vmor %vm64, %vm65
    %v67 = vsel %vm66, %v59, %v63
    %v68 = vand.u32 2147483647, %v57
    %vm69 = vcmp.eq.f32.partialorder %v68, 8.507059e+37
    %v70 = vand.u32 %v57, 2147483648
    %v71 = vor.u32 1.1754944e-38, %v70
    %v72 = vsel %vm69, %v71, %v67
    %v73 = vmul.f32 1.0, %v72
    %v74 = vrcp.pop %v58
    %v75 = vmul.f32 %v58, %v74
    %v76 = vsub.f32 1.0, %v75
    %v77 = vmul.f32 %v74, %v76
    %v78 = vadd.f32 %v74, %v77
    %vm79 = vweird.f32 %v58
    %vm80 = vweird.f32 %v74
    %vm81 = vmor %vm79, %vm80
    %v82 = vsel %vm81, %v74, %v78
    %v83 = vand.u32 2147483647, %v58
    %vm84 = vcmp.eq.f32.partialorder %v83, 8.507059e+37
    %v85 = vand.u32 %v58, 2147483648
    %v86 = vor.u32 1.1754944e-38, %v85
    %v87 = vsel %vm84, %v86, %v82
    %v88 = vmul.f32 1.0, %v87
    %v89 = vmul.f32 %v49, %v73
    %v90 = vmul.f32 %v50, %v88
    %v91 = vmul.f32 %v47, %v89
    %v92 = vmul.f32 %v48, %v90
    %v93 = vlaneseq
    %v94 = vand.u32 %v93, 127
    %vm95 = vcmp.lt.s32.totalorder %v94, 32
    %v96 = vsel %vm95, %v91, 0.0
    %v97 = vsel %vm95, %v92, 0.0
    %v98 = vmul.f32 %v96, %v96
    %v99 = vmul.f32 %v97, %v97
    %vm100 = vcmask 261120
    %v101 = vsel %vm100, %v98, 0.0
    %102 = vadd.xlane.f32.xlu0 %v101
    %v103 = vpop.xlane.xlu0 %102
    %v104 = vsel %vm100, %v99, 0.0
    %105 = vadd.xlane.f32.xlu0 %v104
    %v106 = vpop.xlane.xlu0 %105
    %v107 = vmul.f32 %v103, 0.03125
    %v108 = vmul.f32 %v106, 0.03125
    %v109 = vadd.f32 %v107, 1e-06
    %v110 = vadd.f32 %v108, 1e-06
    %v111 = vrsqrt.pop %v109
    %v112 = vmul.f32 %v111, %v109
    %v113 = vmul.f32 %v112, %v111
    %v114 = vmul.f32 0.5, %v113
    %v115 = vsub.f32 1.5, %v114
    %v116 = vmul.f32 %v111, %v115
    %vm117 = vweird.f32 %v109
    %vm118 = vweird.f32 %v111
    %vm119 = vmor %vm117, %vm118
    %v120 = vsel %vm119, %v111, %v116
    %v121 = vrsqrt.pop %v110
    %v122 = vmul.f32 %v121, %v110
    %v123 = vmul.f32 %v122, %v121
    %v124 = vmul.f32 0.5, %v123
    %v125 = vsub.f32 1.5, %v124
    %v126 = vmul.f32 %v121, %v125
    %vm127 = vweird.f32 %v110
    %vm128 = vweird.f32 %v121
    %vm129 = vmor %vm127, %vm128
    %v130 = vsel %vm129, %v121, %v126
    %v131 = vmul.f32 %v96, %v120
    %v132 = vmul.f32 %v97, %v130
    %v133 = vld [vmem:[%s2] sm:$0x1]
    %v135 = vperm.slane %v133, 0
    %v137 = vmul.f32 %v135, %v131
    %v138 = vmul.f32 %v135, %v132
    %139 = vst.msk [vmem:[#allocation7] sm:$0xff] %vm100, %v137
    %140 = vst.msk [vmem:[#allocation7 + $0x8] sm:$0xff] %vm100, %v138
    // Predicated region
    $region22: #{tpu_custom_call.1} parent=1 // pred_check
      _
    $region23: #{tpu_custom_call.1} parent=1 // pred_check_branch
      %142 = sbr.rel (0) target = $region25
    $region24: #{tpu_custom_call.1} parent=1 // pred_region
      %144 = vsyncadd [#allocation4], 0
      %s145 = sshll.u32 [#allocation7], 4
      %s146 = int_to_ptr.vmem [resolvable:$true] %s145
      %s147 = sshll.u32 %s3, 4
      %s148 = int_to_ptr.hbm [resolvable:$true] %s147
      %153 = dma.vmem_to_hbm [thread:$0]  %s146, 256, %s148, [#allocation4], 128, 128, 8
    $region25: #{tpu_custom_call.1} parent=1 // pred_fallthru
      _
    // Predicated region
    $region26: #{tpu_custom_call.1} parent=1 // pred_check
      _
    $region27: #{tpu_custom_call.1} parent=1 // pred_check_branch
      %155 = sbr.rel (0) target = $region29
    $region28: #{tpu_custom_call.1} parent=1 // pred_region
      %157 = dma.done [#allocation4], 256
    $region29: #{tpu_custom_call.1} parent=1 // pred_fallthru
      _
    %158 = vsyncpa [#allocation3], 1
    %159 = vsyncpa [#allocation6], 1
    %160 = vsyncpa [#allocation4], 1

</llo_original>
